<compile_context>
chip_gen: v5e
topology: v5e:2x2
jax: 0.10.0
libtpu: 0.0.40
codegen_flags: <defaults>
</compile_context>

<pallas_src>
import jax
import jax.numpy as jnp
from jax.experimental import pallas as pl
from jax.experimental.pallas import tpu as pltpu

NEG_SLOPE = 0.1
SPATIAL = 8  # spatial size used when lifting a feature vector to a conv map
             # (8x8 lifted map -> 5x5 valid conv6 -> 4x4 output map)


# ---------------------------------------------------------------------------
# Single fused Pallas kernel: 4-deep MXU matmul chain + 3 leaky-relus in VMEM
# ---------------------------------------------------------------------------

def _fused_kernel(x_ref, w_ref, b_ref, o_ref):
    """x_ref: (M,128) f32, w_ref: (6,128,128) bf16 slab, b_ref: (8,128) f32 slab.

    Weight slab rows:
      [0] stage A  = fc  -> conv                     (128,128)
      [1] stage B  = fc1 -> conv1 -> conv2           (128,128)
      [2] stage C  left half  (cols   0:128 of (128,256))
      [3] stage C  right half (cols 128:256)
      [4] stage D  top rows   (rows   0:128 of (256,64), cols padded to 128)
      [5] stage D  bottom rows(rows 128:256, cols padded to 128)
    Bias slab rows 0..4 match stages A, B, C-left, C-right, D.
    """
    def lrelu(v):
        return jnp.maximum(v, v * NEG_SLOPE)

    def mm(v, i, j):
        return (jnp.dot(v.astype(jnp.bfloat16), w_ref[i],
                        preferred_element_type=jnp.float32)
                + b_ref[j:j + 1, :])

    x = x_ref[...].astype(jnp.float32)          # (M, 128)
    vA = lrelu(mm(x, 0, 0))                     # fc  -> conv   -> max -> lrelu
    vB = lrelu(mm(vA, 1, 1))                    # fc1 -> conv1 -> conv2 -> ...
    cL = lrelu(mm(vB, 2, 2))                    # fc2 -> conv3 -> conv4 (left)
    cR = lrelu(mm(vB, 3, 3))                    #                      (right)
    out = (jnp.dot(cL.astype(jnp.bfloat16), w_ref[4],
                   preferred_element_type=jnp.float32)
           + jnp.dot(cR.astype(jnp.bfloat16), w_ref[5],
                     preferred_element_type=jnp.float32)
           + b_ref[4:5, :])                     # fc3 -> conv5 -> conv6
    o_ref[...] = out.astype(o_ref.dtype)


def fused_forward(w_slab, b_slab, x1):
    m = x1.shape[0]
    vec = pl.pallas_call(
        _fused_kernel,
        out_shape=jax.ShapeDtypeStruct((m, 128), jnp.float32),
        in_specs=[pl.BlockSpec(memory_space=pltpu.MemorySpace.VMEM)] * 3,
        out_specs=pl.BlockSpec(memory_space=pltpu.MemorySpace.VMEM),
    )(x1, w_slab, b_slab)

    # Undo lane padding (64 real out-features) and materialize the spatially
    # constant conv6 map directly in PyTorch NCHW layout with one broadcast.
    v16 = vec[:, :64]
    return jax.lax.broadcast_in_dim(v16, (m, 64, 4, 4), (0, 1))


# ---------------------------------------------------------------------------
# Parameters (deterministic, PyTorch-default-style uniform init) — shapes kept
# exactly as declared in the PyTorch __init__, then algebraically collapsed.
# ---------------------------------------------------------------------------

def _lin_init(key, in_f, out_f):
    k1, k2 = jax.random.split(key)
    s = 1.0 / float(in_f) ** 0.5
    w = jax.random.uniform(k1, (in_f, out_f), jnp.float32, -s, s)
    b = jax.random.uniform(k2, (out_f,), jnp.float32, -s, s)
    return w, b


def _conv_init(key, cin, cout, k):
    k1, k2 = jax.random.split(key)
    s = 1.0 / float(cin * k * k) ** 0.5
    w = jax.random.uniform(k1, (k, k, cin, cout), jnp.float32, -s, s)
    b = jax.random.uniform(k2, (cout,), jnp.float32, -s, s)
    return w, b


def init_params(key):
    ks = jax.random.split(key, 11)
    return {
        "fc":    _lin_init(ks[0], 128, 64),
        "conv":  _conv_init(ks[1], 128, 128, 2),
        "fc1":   _lin_init(ks[2], 64, 32),
        "conv1": _conv_init(ks[3], 32, 64, 1),
        "conv2": _conv_init(ks[4], 64, 128, 2),
        "fc2":   _lin_init(ks[5], 128, 64),
        "conv3": _conv_init(ks[6], 64, 128, 1),
        "conv4": _conv_init(ks[7], 128, 256, 5),
        "fc3":   _lin_init(ks[8], 256, 128),
        "conv5": _conv_init(ks[9], 128, 32, 1),
        "conv6": _conv_init(ks[10], 32, 64, 5),
    }


def prepare_params(params):
    """Offline fusion: collapse convs (spatially-constant input => sum over
    KH,KW), fold the glue, and fuse each affine chain into one weight+bias.
    Returns a packed bf16 weight slab (6,128,128) and f32 bias slab (8,128)."""

    def conv_c(name):
        w, b = params[name]
        return jnp.sum(w, axis=(0, 1)), b     # (Cin,Cout), (Cout,)

    # Stage A: fc -> conv
    wfc, bfc = params["fc"]
    wc, bc = conv_c("conv")
    # TODO(synk): original graph feeds a 64-feature vector into a 128-in-channel
    # conv; zero-padding 64->128 == keep only the first 64 input rows.
    wc = wc[:64, :]
    W_A = wfc @ wc                              # (128,128)
    b_A = bfc @ wc + bc                         # (128,)

    # Stage B: fc1 -> conv1 -> conv2
    wfc1, bfc1 = params["fc1"]
    # TODO(synk): fc1 expects 64 inputs but the spatial max yields 128 channels;
    # "take the first 64 features" == zero-pad fc1 weight rows 64..127.
    wfc1 = jnp.concatenate([wfc1, jnp.zeros((64, 32), jnp.float32)], axis=0)
    wc1, bc1 = conv_c("conv1")
    wc2, bc2 = conv_c("conv2")
    W_B = wfc1 @ wc1 @ wc2                      # (128,128)
    b_B = (bfc1 @ wc1 + bc1) @ wc2 + bc2        # (128,)

    # Stage C: fc2 -> conv3 -> conv4
    wfc2, bfc2 = params["fc2"]
    wc3, bc3 = conv_c("conv3")
    wc4, bc4 = conv_c("conv4")
    W_C = wfc2 @ wc3 @ wc4                      # (128,256)
    b_C = (bfc2 @ wc3 + bc3) @ wc4 + bc4        # (256,)

    # Stage D: fc3 -> conv5 -> conv6
    wfc3, bfc3 = params["fc3"]
    wc5, bc5 = conv_c("conv5")
    wc6, bc6 = conv_c("conv6")
    W_D = wfc3 @ wc5 @ wc6                      # (256,64)
    b_D = (bfc3 @ wc5 + bc5) @ wc6 + bc6        # (64,)

    pad_cols = lambda a: jnp.pad(a, ((0, 0), (0, 128 - a.shape[1])))
    w_slab = jnp.stack([
        W_A,                    # [0]
        W_B,                    # [1]
        W_C[:, :128],           # [2]
        W_C[:, 128:],           # [3]
        pad_cols(W_D[:128, :]),   # [4]
        pad_cols(W_D[128:, :]),   # [5]
    ]).astype(jnp.bfloat16)

    b_slab = jnp.zeros((8, 128), jnp.float32)
    b_slab = b_slab.at[0].set(b_A).at[1].set(b_B)
    b_slab = b_slab.at[2].set(b_C[:128]).at[3].set(b_C[128:])
    b_slab = b_slab.at[4, :64].set(b_D)

    return w_slab, b_slab


# ---------------------------------------------------------------------------
# Pure-JAX reference (original 11-op chain with the same documented glue)
# ---------------------------------------------------------------------------

def reference_forward(params, x1):
    lrelu = lambda v: jnp.where(v > 0, v, v * NEG_SLOPE)

    def conv_c(name):
        w, b = params[name]
        return jnp.sum(w, axis=(0, 1)), b

    wfc, bfc = params["fc"]
    v0 = x1 @ wfc + bfc
    wc, bc = conv_c("conv")
    v1 = v0 @ wc[:64, :] + bc                  # glue: zero-pad 64->128 channels
    v3 = lrelu(v1)                             # spatial max of constant map = id
    wfc1, bfc1 = params["fc1"]
    v4 = v3[:, :64] @ wfc1 + bfc1              # glue: take first 64 features
    wc1, bc1 = conv_c("conv1"); v5 = v4 @ wc1 + bc1
    wc2, bc2 = conv_c("conv2"); v6 = v5 @ wc2 + bc2
    v8 = lrelu(v6)
    wfc2, bfc2 = params["fc2"]; v9 = v8 @ wfc2 + bfc2
    wc3, bc3 = conv_c("conv3"); v10 = v9 @ wc3 + bc3
    wc4, bc4 = conv_c("conv4"); v11 = v10 @ wc4 + bc4
    v13 = lrelu(v11)
    wfc3, bfc3 = params["fc3"]; v14 = v13 @ wfc3 + bfc3
    wc5, bc5 = conv_c("conv5"); v15 = v14 @ wc5 + bc5
    wc6, bc6 = conv_c("conv6"); v16 = v15 @ wc6 + bc6
    return jax.lax.broadcast_in_dim(v16, (x1.shape[0], 64, 4, 4), (0, 1))


# ---------------------------------------------------------------------------

if __name__ == "__main__":
    key = jax.random.PRNGKey(0)
    pkey, xkey = jax.random.split(key)

    params = init_params(pkey)
    w_slab, b_slab = prepare_params(params)

    x1 = jax.random.normal(xkey, (1, 128), jnp.float32)  # matches torch.randn(1, 128)

    fwd = jax.jit(fused_forward)
    out = jax.block_until_ready(fwd(w_slab, b_slab, x1))

    ref = reference_forward(params, x1)

    assert out.shape == (1, 64, 4, 4)
    assert bool(jnp.all(jnp.isfinite(out)))
    # bf16 weights/activations vs f32 reference: loose tolerance.
    assert bool(jnp.allclose(out, ref, rtol=5e-2, atol=2e-2)), \
        "mismatch vs pure-JAX reference"
    print("KERNEL_OK")
</pallas_src>

<mosaic_0001>
module attributes {stable_mosaic.version = 11 : i64} {
  func.func @_fused_kernel(%arg0: memref<1x128xf32, #tpu.memory_space<vmem>>, %arg1: memref<6x128x128xbf16, #tpu.memory_space<vmem>>, %arg2: memref<8x128xf32, #tpu.memory_space<vmem>>, %arg3: memref<1x128xf32, #tpu.memory_space<vmem>>) attributes {dimension_semantics = [], scalar_prefetch = 0 : i64, scratch_operands = 0 : i64, tpu.core_type = #tpu.core_type<tc>} {
    %c0 = arith.constant 0 : index
    %c0_0 = arith.constant 0 : index
    %0 = vector.load %arg0[%c0, %c0_0] : memref<1x128xf32, #tpu.memory_space<vmem>>, vector<1x128xf32>
    %1 = arith.truncf %0 : vector<1x128xf32> to vector<1x128xbf16>
    %c0_1 = arith.constant 0 : index
    %c0_2 = arith.constant 0 : index
    %c0_3 = arith.constant 0 : index
    %2 = vector.load %arg1[%c0_1, %c0_2, %c0_3] : memref<6x128x128xbf16, #tpu.memory_space<vmem>>, vector<1x128x128xbf16>
    %3 = vector.shape_cast %2 : vector<1x128x128xbf16> to vector<128x128xbf16>
    %cst = arith.constant dense<0.000000e+00> : vector<1x128xf32>
    %4 = tpu.matmul %1, %3, %cst {dimension_numbers = #tpu.dot_dimension_numbers<[1], [0], [0], [1], [0, 0, 1, 1], [], []>} : vector<1x128xbf16>, vector<128x128xbf16>, vector<1x128xf32> -> vector<1x128xf32>
    %c0_4 = arith.constant 0 : index
    %c0_5 = arith.constant 0 : index
    %5 = vector.load %arg2[%c0_4, %c0_5] : memref<8x128xf32, #tpu.memory_space<vmem>>, vector<1x128xf32>
    %6 = arith.addf %4, %5 : vector<1x128xf32>
    %cst_6 = arith.constant 1.000000e-01 : f32
    %7 = vector.broadcast %cst_6 : f32 to vector<1x128xf32>
    %8 = arith.mulf %6, %7 : vector<1x128xf32>
    %9 = arith.maximumf %6, %8 : vector<1x128xf32>
    %10 = arith.truncf %9 : vector<1x128xf32> to vector<1x128xbf16>
    %c1 = arith.constant 1 : index
    %c0_7 = arith.constant 0 : index
    %c0_8 = arith.constant 0 : index
    %11 = vector.load %arg1[%c1, %c0_7, %c0_8] : memref<6x128x128xbf16, #tpu.memory_space<vmem>>, vector<1x128x128xbf16>
    %12 = vector.shape_cast %11 : vector<1x128x128xbf16> to vector<128x128xbf16>
    %cst_9 = arith.constant dense<0.000000e+00> : vector<1x128xf32>
    %13 = tpu.matmul %10, %12, %cst_9 {dimension_numbers = #tpu.dot_dimension_numbers<[1], [0], [0], [1], [0, 0, 1, 1], [], []>} : vector<1x128xbf16>, vector<128x128xbf16>, vector<1x128xf32> -> vector<1x128xf32>
    %c1_10 = arith.constant 1 : index
    %c0_11 = arith.constant 0 : index
    %14 = vector.load %arg2[%c1_10, %c0_11] : memref<8x128xf32, #tpu.memory_space<vmem>>, vector<1x128xf32>
    %15 = arith.addf %13, %14 : vector<1x128xf32>
    %cst_12 = arith.constant 1.000000e-01 : f32
    %16 = vector.broadcast %cst_12 : f32 to vector<1x128xf32>
    %17 = arith.mulf %15, %16 : vector<1x128xf32>
    %18 = arith.maximumf %15, %17 : vector<1x128xf32>
    %19 = arith.truncf %18 : vector<1x128xf32> to vector<1x128xbf16>
    %c2 = arith.constant 2 : index
    %c0_13 = arith.constant 0 : index
    %c0_14 = arith.constant 0 : index
    %20 = vector.load %arg1[%c2, %c0_13, %c0_14] : memref<6x128x128xbf16, #tpu.memory_space<vmem>>, vector<1x128x128xbf16>
    %21 = vector.shape_cast %20 : vector<1x128x128xbf16> to vector<128x128xbf16>
    %cst_15 = arith.constant dense<0.000000e+00> : vector<1x128xf32>
    %22 = tpu.matmul %19, %21, %cst_15 {dimension_numbers = #tpu.dot_dimension_numbers<[1], [0], [0], [1], [0, 0, 1, 1], [], []>} : vector<1x128xbf16>, vector<128x128xbf16>, vector<1x128xf32> -> vector<1x128xf32>
    %c2_16 = arith.constant 2 : index
    %c0_17 = arith.constant 0 : index
    %23 = vector.load %arg2[%c2_16, %c0_17] : memref<8x128xf32, #tpu.memory_space<vmem>>, vector<1x128xf32>
    %24 = arith.addf %22, %23 : vector<1x128xf32>
    %cst_18 = arith.constant 1.000000e-01 : f32
    %25 = vector.broadcast %cst_18 : f32 to vector<1x128xf32>
    %26 = arith.mulf %24, %25 : vector<1x128xf32>
    %27 = arith.maximumf %24, %26 : vector<1x128xf32>
    %28 = arith.truncf %18 : vector<1x128xf32> to vector<1x128xbf16>
    %c3 = arith.constant 3 : index
    %c0_19 = arith.constant 0 : index
    %c0_20 = arith.constant 0 : index
    %29 = vector.load %arg1[%c3, %c0_19, %c0_20] : memref<6x128x128xbf16, #tpu.memory_space<vmem>>, vector<1x128x128xbf16>
    %30 = vector.shape_cast %29 : vector<1x128x128xbf16> to vector<128x128xbf16>
    %cst_21 = arith.constant dense<0.000000e+00> : vector<1x128xf32>
    %31 = tpu.matmul %28, %30, %cst_21 {dimension_numbers = #tpu.dot_dimension_numbers<[1], [0], [0], [1], [0, 0, 1, 1], [], []>} : vector<1x128xbf16>, vector<128x128xbf16>, vector<1x128xf32> -> vector<1x128xf32>
    %c3_22 = arith.constant 3 : index
    %c0_23 = arith.constant 0 : index
    %32 = vector.load %arg2[%c3_22, %c0_23] : memref<8x128xf32, #tpu.memory_space<vmem>>, vector<1x128xf32>
    %33 = arith.addf %31, %32 : vector<1x128xf32>
    %cst_24 = arith.constant 1.000000e-01 : f32
    %34 = vector.broadcast %cst_24 : f32 to vector<1x128xf32>
    %35 = arith.mulf %33, %34 : vector<1x128xf32>
    %36 = arith.maximumf %33, %35 : vector<1x128xf32>
    %37 = arith.truncf %27 : vector<1x128xf32> to vector<1x128xbf16>
    %c4 = arith.constant 4 : index
    %c0_25 = arith.constant 0 : index
    %c0_26 = arith.constant 0 : index
    %38 = vector.load %arg1[%c4, %c0_25, %c0_26] : memref<6x128x128xbf16, #tpu.memory_space<vmem>>, vector<1x128x128xbf16>
    %39 = vector.shape_cast %38 : vector<1x128x128xbf16> to vector<128x128xbf16>
    %cst_27 = arith.constant dense<0.000000e+00> : vector<1x128xf32>
    %40 = tpu.matmul %37, %39, %cst_27 {dimension_numbers = #tpu.dot_dimension_numbers<[1], [0], [0], [1], [0, 0, 1, 1], [], []>} : vector<1x128xbf16>, vector<128x128xbf16>, vector<1x128xf32> -> vector<1x128xf32>
    %41 = arith.truncf %36 : vector<1x128xf32> to vector<1x128xbf16>
    %c5 = arith.constant 5 : index
    %c0_28 = arith.constant 0 : index
    %c0_29 = arith.constant 0 : index
    %42 = vector.load %arg1[%c5, %c0_28, %c0_29] : memref<6x128x128xbf16, #tpu.memory_space<vmem>>, vector<1x128x128xbf16>
    %43 = vector.shape_cast %42 : vector<1x128x128xbf16> to vector<128x128xbf16>
    %cst_30 = arith.constant dense<0.000000e+00> : vector<1x128xf32>
    %44 = tpu.matmul %41, %43, %cst_30 {dimension_numbers = #tpu.dot_dimension_numbers<[1], [0], [0], [1], [0, 0, 1, 1], [], []>} : vector<1x128xbf16>, vector<128x128xbf16>, vector<1x128xf32> -> vector<1x128xf32>
    %45 = arith.addf %40, %44 : vector<1x128xf32>
    %c4_31 = arith.constant 4 : index
    %c0_32 = arith.constant 0 : index
    %46 = vector.load %arg2[%c4_31, %c0_32] : memref<8x128xf32, #tpu.memory_space<vmem>>, vector<1x128xf32>
    %47 = arith.addf %45, %46 : vector<1x128xf32>
    %c0_33 = arith.constant 0 : index
    %c0_34 = arith.constant 0 : index
    %48 = vector.load %arg3[%c0_33, %c0_34] : memref<1x128xf32, #tpu.memory_space<vmem>>, vector<1x128xf32>
    tpu.vector_store %arg3[%c0_33, %c0_34], %47 {strides = array<i32>} : memref<1x128xf32, #tpu.memory_space<vmem>>, vector<1x128xf32>,
    return
  }
}

</mosaic_0001>

<llo_original>
// kernel: fused_forward.1
$region0: #{fused_forward.1}
  #allocation0 [shape = 'u32[]', space=smem, size = 0x4, offset = 0x4, fixed_abs, tag = 'smem constant byte address 0x4 - core index']
  #allocation1 [shape = 'u32[72,128]{1,0:T(1,128)}', space=vmem, size = 0x9000, scoped, tag = 'internal scratch']
  %s0 = inlined_call_operand.vmem [shape: f32[1,128], index: 0, kind: input, shape index: {}]
  %s1 = inlined_call_operand.hbm [shape: bf16[6,128,128], index: 1, kind: input, shape index: {}]
  %s2 = inlined_call_operand.hbm [shape: f32[8,128], index: 2, kind: input, shape index: {}]
  %s3 = inlined_call_operand.vmem [shape: f32[1,128], index: 3, kind: output, shape index: {}]
  %s4 = sld [smem:[#allocation0]]
  $region30: #{fused_forward.1} parent=0
    _
  %s6 = ssub.s32 1, %s4
  %s7 = scalar_select 0, %s6, %s4
  $region1: #{fused_forward.1} parent=0
    #allocation2 [shape = 'u8[196608]{0}', space=vmem, size = 0x30000, scoped, tag = 'input window, operand 1, single buffered']
    #allocation3 [shape = 's32[1]{0}', space=sflag, size = 0x4, scoped, tag = 'scoped memory for fused_forward.1']
    #allocation4 [shape = 'u8[4096]{0}', space=vmem, size = 0x1000, scoped, tag = 'input window, operand 2, single buffered']
    #allocation5 [shape = 's32[1]{0}', space=sflag, size = 0x4, scoped, tag = 'scoped memory for fused_forward.1']
    %8 = vsyncpa [#allocation3], 0
    %9 = vsyncpa [#allocation5], 0
    // Predicated region
    $region2: #{fused_forward.1} parent=1 // pred_check
      _
    $region3: #{fused_forward.1} parent=1 // pred_check_branch
      %11 = sbr.rel (0) target = $region5
    $region4: #{fused_forward.1} parent=1 // pred_region
      _
    $region5: #{fused_forward.1} parent=1 // pred_fallthru
      _
    // Predicated region
    $region6: #{fused_forward.1} parent=1 // pred_check
      _
    $region7: #{fused_forward.1} parent=1 // pred_check_branch
      %13 = sbr.rel (0) target = $region9
    $region8: #{fused_forward.1} parent=1 // pred_region
      %15 = vsyncadd [#allocation3], 0
      %s16 = sshll.u32 %s1, 4
      %s17 = int_to_ptr.hbm [resolvable:$true] %s16
      %s18 = sshll.u32 [#allocation2], 4
      %s19 = int_to_ptr.vmem [resolvable:$true] %s18
      %24 = dma.hbm_to_vmem [thread:$0]  %s17, 6144, %s19, [#allocation3], 64, 64, 4
    $region9: #{fused_forward.1} parent=1 // pred_fallthru
      _
    // Predicated region
    $region10: #{fused_forward.1} parent=1 // pred_check
      _
    $region11: #{fused_forward.1} parent=1 // pred_check_branch
      %26 = sbr.rel (0) target = $region13
    $region12: #{fused_forward.1} parent=1 // pred_region
      %28 = vsyncadd [#allocation5], 0
      %s30 = sshll.u32 %s2, 4
      %s31 = int_to_ptr.hbm [resolvable:$true] %s30
      %s32 = sshll.u32 [#allocation4], 4
      %s33 = int_to_ptr.vmem [resolvable:$true] %s32
      %35 = dma.hbm_to_vmem [thread:$0]  %s31, 128, %s33, [#allocation5]
    $region13: #{fused_forward.1} parent=1 // pred_fallthru
      _
    // Predicated region
    $region14: #{fused_forward.1} parent=1 // pred_check
      _
    $region15: #{fused_forward.1} parent=1 // pred_check_branch
      %37 = sbr.rel (0) target = $region17
    $region16: #{fused_forward.1} parent=1 // pred_region
      %39 = dma.done [#allocation3], 6144
    $region17: #{fused_forward.1} parent=1 // pred_fallthru
      _
    // Predicated region
    $region18: #{fused_forward.1} parent=1 // pred_check
      _
    $region19: #{fused_forward.1} parent=1 // pred_check_branch
      %41 = sbr.rel (0) target = $region21
    $region20: #{fused_forward.1} parent=1 // pred_region
      %43 = dma.done [#allocation5], 128
    $region21: #{fused_forward.1} parent=1 // pred_fallthru
      _
    %v44 = vld [vmem:[%s0] sm:$0x1]
    %v45 = vpack.c.bf16 %v44, %v44
    %v46 = vld [vmem:[#allocation2] sm:$0xf]
    %v47 = vld [vmem:[#allocation2 + $0x4] sm:$0xf]
    %v48 = vld [vmem:[#allocation2 + $0x8] sm:$0xf]
    %v49 = vld [vmem:[#allocation2 + $0xc] sm:$0xf]
    %v50 = vld [vmem:[#allocation2 + $0x10] sm:$0xf]
    %v51 = vld [vmem:[#allocation2 + $0x14] sm:$0xf]
    %v52 = vld [vmem:[#allocation2 + $0x18] sm:$0xf]
    %v53 = vld [vmem:[#allocation2 + $0x1c] sm:$0xf]
    %v54 = vld [vmem:[#allocation2 + $0x20] sm:$0xf]
    %v55 = vld [vmem:[#allocation2 + $0x24] sm:$0xf]
    %v56 = vld [vmem:[#allocation2 + $0x28] sm:$0xf]
    %v57 = vld [vmem:[#allocation2 + $0x2c] sm:$0xf]
    %v58 = vld [vmem:[#allocation2 + $0x30] sm:$0xf]
    %v59 = vld [vmem:[#allocation2 + $0x34] sm:$0xf]
    %v60 = vld [vmem:[#allocation2 + $0x38] sm:$0xf]
    %v61 = vld [vmem:[#allocation2 + $0x3c] sm:$0xf]
    %v62 = vld [vmem:[#allocation4] sm:$0x1]
    %v79 = vunpack.c.l.b16 %v46
    %v80 = vunpack.c.l.b16 %v47
    %v81 = vunpack.c.l.b16 %v48
    %v82 = vunpack.c.l.b16 %v49
    %v83 = vunpack.c.l.b16 %v50
    %v84 = vunpack.c.l.b16 %v51
    %v85 = vunpack.c.l.b16 %v52
    %v86 = vunpack.c.l.b16 %v53
    %v87 = vunpack.c.l.b16 %v54
    %v88 = vunpack.c.l.b16 %v55
    %v89 = vunpack.c.l.b16 %v56
    %v90 = vunpack.c.l.b16 %v57
    %v91 = vunpack.c.l.b16 %v58
    %v92 = vunpack.c.l.b16 %v59
    %v93 = vunpack.c.l.b16 %v60
    %v94 = vunpack.c.l.b16 %v61
    %v95 = vpack.c.b16 %v80, %v79
    %v96 = vpack.c.b16 %v82, %v81
    %v97 = vpack.c.b16 %v84, %v83
    %v98 = vpack.c.b16 %v86, %v85
    %v99 = vpack.c.b16 %v88, %v87
    %v100 = vpack.c.b16 %v90, %v89
    %v101 = vpack.c.b16 %v92, %v91
    %v102 = vpack.c.b16 %v94, %v93
    %111 = vmatpush.bf16.msra.mxu0 %v102
    %112 = vmatpush.bf16.msra.mxu0 %v101
    %113 = vmatpush.bf16.msra.mxu0 %v100
    %114 = vmatpush.bf16.msra.mxu0 %v99
    %115 = vmatpush.bf16.msra.mxu0 %v98
    %116 = vmatpush.bf16.msra.mxu0 %v97
    %117 = vmatpush.bf16.msra.mxu0 %v96
    %118 = vmatpush.bf16.msra.mxu0 %v95
    %119 = vmatmul.bf16.gmra.mxu0 %v45
    %v120 = vpop.f32.mrf.mxu0
    %v121 = vadd.f32 %v62, %v120
    %v122 = vpop.f32.mrf.mxu0
    %123 = vdwg.mxu0
    %v124 = vmul.f32 %v121, 0.1
    %v125 = vmax.f32 %v121, %v124
    %v126 = vpack.c.bf16 %v125, %v125
    %s127 = scalar_lea.vmem [#allocation2], 64
    %v128 = vld [vmem:[%s127] sm:$0xf]
    %v129 = vld [vmem:[%s127 + $0x4] sm:$0xf]
    %v130 = vld [vmem:[%s127 + $0x8] sm:$0xf]
    %v131 = vld [vmem:[%s127 + $0xc] sm:$0xf]
    %v132 = vld [vmem:[%s127 + $0x10] sm:$0xf]
    %v133 = vld [vmem:[%s127 + $0x14] sm:$0xf]
    %v134 = vld [vmem:[%s127 + $0x18] sm:$0xf]
    %v135 = vld [vmem:[%s127 + $0x1c] sm:$0xf]
    %v136 = vld [vmem:[%s127 + $0x20] sm:$0xf]
    %v137 = vld [vmem:[%s127 + $0x24] sm:$0xf]
    %v138 = vld [vmem:[%s127 + $0x28] sm:$0xf]
    %v139 = vld [vmem:[%s127 + $0x2c] sm:$0xf]
    %v140 = vld [vmem:[%s127 + $0x30] sm:$0xf]
    %v141 = vld [vmem:[%s127 + $0x34] sm:$0xf]
    %v142 = vld [vmem:[%s127 + $0x38] sm:$0xf]
    %v143 = vld [vmem:[%s127 + $0x3c] sm:$0xf]
    %v144 = vld [vmem:[#allocation4 + $0x1] sm:$0x1]
    %v161 = vunpack.c.l.b16 %v128
    %v162 = vunpack.c.l.b16 %v129
    %v163 = vunpack.c.l.b16 %v130
    %v164 = vunpack.c.l.b16 %v131
    %v165 = vunpack.c.l.b16 %v132
    %v166 = vunpack.c.l.b16 %v133
    %v167 = vunpack.c.l.b16 %v134
    %v168 = vunpack.c.l.b16 %v135
    %v169 = vunpack.c.l.b16 %v136
    %v170 = vunpack.c.l.b16 %v137
    %v171 = vunpack.c.l.b16 %v138
    %v172 = vunpack.c.l.b16 %v139
    %v173 = vunpack.c.l.b16 %v140
    %v174 = vunpack.c.l.b16 %v141
    %v175 = vunpack.c.l.b16 %v142
    %v176 = vunpack.c.l.b16 %v143
    %v177 = vpack.c.b16 %v162, %v161
    %v178 = vpack.c.b16 %v164, %v163
    %v179 = vpack.c.b16 %v166, %v165
    %v180 = vpack.c.b16 %v168, %v167
    %v181 = vpack.c.b16 %v170, %v169
    %v182 = vpack.c.b16 %v172, %v171
    %v183 = vpack.c.b16 %v174, %v173
    %v184 = vpack.c.b16 %v176, %v175
    %193 = vmatpush.bf16.msra.mxu0 %v184
    %194 = vmatpush.bf16.msra.mxu0 %v183
    %195 = vmatpush.bf16.msra.mxu0 %v182
    %196 = vmatpush.bf16.msra.mxu0 %v181
    %197 = vmatpush.bf16.msra.mxu0 %v180
    %198 = vmatpush.bf16.msra.mxu0 %v179
    %199 = vmatpush.bf16.msra.mxu0 %v178
    %200 = vmatpush.bf16.msra.mxu0 %v177
    %201 = vmatmul.bf16.gmra.mxu0 %v126
    %v202 = vpop.f32.mrf.mxu0
    %v203 = vadd.f32 %v144, %v202
    %v204 = vpop.f32.mrf.mxu0
    %205 = vdwg.mxu0
    %v206 = vmul.f32 %v203, 0.1
    %v207 = vmax.f32 %v203, %v206
    %v208 = vpack.c.bf16 %v207, %v207
    %s209 = scalar_lea.vmem [#allocation2], 128
    %v210 = vld [vmem:[%s209] sm:$0xf]
    %v211 = vld [vmem:[%s209 + $0x4] sm:$0xf]
    %v212 = vld [vmem:[%s209 + $0x8] sm:$0xf]
    %v213 = vld [vmem:[%s209 + $0xc] sm:$0xf]
    %v214 = vld [vmem:[%s209 + $0x10] sm:$0xf]
    %v215 = vld [vmem:[%s209 + $0x14] sm:$0xf]
    %v216 = vld [vmem:[%s209 + $0x18] sm:$0xf]
    %v217 = vld [vmem:[%s209 + $0x1c] sm:$0xf]
    %v218 = vld [vmem:[%s209 + $0x20] sm:$0xf]
    %v219 = vld [vmem:[%s209 + $0x24] sm:$0xf]
    %v220 = vld [vmem:[%s209 + $0x28] sm:$0xf]
    %v221 = vld [vmem:[%s209 + $0x2c] sm:$0xf]
    %v222 = vld [vmem:[%s209 + $0x30] sm:$0xf]
    %v223 = vld [vmem:[%s209 + $0x34] sm:$0xf]
    %v224 = vld [vmem:[%s209 + $0x38] sm:$0xf]
    %v225 = vld [vmem:[%s209 + $0x3c] sm:$0xf]
    %v226 = vld [vmem:[#allocation4 + $0x2] sm:$0x1]
    %v243 = vunpack.c.l.b16 %v210
    %v244 = vunpack.c.l.b16 %v211
    %v245 = vunpack.c.l.b16 %v212
    %v246 = vunpack.c.l.b16 %v213
    %v247 = vunpack.c.l.b16 %v214
    %v248 = vunpack.c.l.b16 %v215
    %v249 = vunpack.c.l.b16 %v216
    %v250 = vunpack.c.l.b16 %v217
    %v251 = vunpack.c.l.b16 %v218
    %v252 = vunpack.c.l.b16 %v219
    %v253 = vunpack.c.l.b16 %v220
    %v254 = vunpack.c.l.b16 %v221
    %v255 = vunpack.c.l.b16 %v222
    %v256 = vunpack.c.l.b16 %v223
    %v257 = vunpack.c.l.b16 %v224
    %v258 = vunpack.c.l.b16 %v225
    %v259 = vpack.c.b16 %v244, %v243
    %v260 = vpack.c.b16 %v246, %v245
    %v261 = vpack.c.b16 %v248, %v247
    %v262 = vpack.c.b16 %v250, %v249
    %v263 = vpack.c.b16 %v252, %v251
    %v264 = vpack.c.b16 %v254, %v253
    %v265 = vpack.c.b16 %v256, %v255
    %v266 = vpack.c.b16 %v258, %v257
    %275 = vmatpush.bf16.msra.mxu0 %v266
    %276 = vmatpush.bf16.msra.mxu0 %v265
    %277 = vmatpush.bf16.msra.mxu0 %v264
    %278 = vmatpush.bf16.msra.mxu0 %v263
    %279 = vmatpush.bf16.msra.mxu0 %v262
    %280 = vmatpush.bf16.msra.mxu0 %v261
    %281 = vmatpush.bf16.msra.mxu0 %v260
    %282 = vmatpush.bf16.msra.mxu0 %v259
    %283 = vmatmul.bf16.gmra.mxu0 %v208
    %v284 = vpop.f32.mrf.mxu0
    %v285 = vadd.f32 %v226, %v284
    %v286 = vpop.f32.mrf.mxu0
    %287 = vdwg.mxu0
    %v288 = vmul.f32 %v285, 0.1
    %v289 = vmax.f32 %v285, %v288
    %s290 = scalar_lea.vmem [#allocation2], 192
    %v291 = vld [vmem:[%s290] sm:$0xf]
    %v292 = vld [vmem:[%s290 + $0x4] sm:$0xf]
    %v293 = vld [vmem:[%s290 + $0x8] sm:$0xf]
    %v294 = vld [vmem:[%s290 + $0xc] sm:$0xf]
    %v295 = vld [vmem:[%s290 + $0x10] sm:$0xf]
    %v296 = vld [vmem:[%s290 + $0x14] sm:$0xf]
    %v297 = vld [vmem:[%s290 + $0x18] sm:$0xf]
    %v298 = vld [vmem:[%s290 + $0x1c] sm:$0xf]
    %v299 = vld [vmem:[%s290 + $0x20] sm:$0xf]
    %v300 = vld [vmem:[%s290 + $0x24] sm:$0xf]
    %v301 = vld [vmem:[%s290 + $0x28] sm:$0xf]
    %v302 = vld [vmem:[%s290 + $0x2c] sm:$0xf]
    %v303 = vld [vmem:[%s290 + $0x30] sm:$0xf]
    %v304 = vld [vmem:[%s290 + $0x34] sm:$0xf]
    %v305 = vld [vmem:[%s290 + $0x38] sm:$0xf]
    %v306 = vld [vmem:[%s290 + $0x3c] sm:$0xf]
    %v307 = vld [vmem:[#allocation4 + $0x3] sm:$0x1]
    %v324 = vunpack.c.l.b16 %v291
    %v325 = vunpack.c.l.b16 %v292
    %v326 = vunpack.c.l.b16 %v293
    %v327 = vunpack.c.l.b16 %v294
    %v328 = vunpack.c.l.b16 %v295
    %v329 = vunpack.c.l.b16 %v296
    %v330 = vunpack.c.l.b16 %v297
    %v331 = vunpack.c.l.b16 %v298
    %v332 = vunpack.c.l.b16 %v299
    %v333 = vunpack.c.l.b16 %v300
    %v334 = vunpack.c.l.b16 %v301
    %v335 = vunpack.c.l.b16 %v302
    %v336 = vunpack.c.l.b16 %v303
    %v337 = vunpack.c.l.b16 %v304
    %v338 = vunpack.c.l.b16 %v305
    %v339 = vunpack.c.l.b16 %v306
    %v340 = vpack.c.b16 %v325, %v324
    %v341 = vpack.c.b16 %v327, %v326
    %v342 = vpack.c.b16 %v329, %v328
    %v343 = vpack.c.b16 %v331, %v330
    %v344 = vpack.c.b16 %v333, %v332
    %v345 = vpack.c.b16 %v335, %v334
    %v346 = vpack.c.b16 %v337, %v336
    %v347 = vpack.c.b16 %v339, %v338
    %356 = vmatpush.bf16.msra.mxu0 %v347
    %357 = vmatpush.bf16.msra.mxu0 %v346
    %358 = vmatpush.bf16.msra.mxu0 %v345
    %359 = vmatpush.bf16.msra.mxu0 %v344
    %360 = vmatpush.bf16.msra.mxu0 %v343
    %361 = vmatpush.bf16.msra.mxu0 %v342
    %362 = vmatpush.bf16.msra.mxu0 %v341
    %363 = vmatpush.bf16.msra.mxu0 %v340
    %364 = vmatmul.bf16.gmra.mxu0 %v208
    %v365 = vpop.f32.mrf.mxu0
    %v366 = vadd.f32 %v307, %v365
    %v367 = vpop.f32.mrf.mxu0
    %368 = vdwg.mxu0
    %v369 = vmul.f32 %v366, 0.1
    %v370 = vmax.f32 %v366, %v369
    %v371 = vpack.c.bf16 %v289, %v289
    %s372 = scalar_lea.vmem [#allocation2], 256
    %v373 = vld [vmem:[%s372] sm:$0xf]
    %v374 = vld [vmem:[%s372 + $0x4] sm:$0xf]
    %v375 = vld [vmem:[%s372 + $0x8] sm:$0xf]
    %v376 = vld [vmem:[%s372 + $0xc] sm:$0xf]
    %v377 = vld [vmem:[%s372 + $0x10] sm:$0xf]
    %v378 = vld [vmem:[%s372 + $0x14] sm:$0xf]
    %v379 = vld [vmem:[%s372 + $0x18] sm:$0xf]
    %v380 = vld [vmem:[%s372 + $0x1c] sm:$0xf]
    %v381 = vld [vmem:[%s372 + $0x20] sm:$0xf]
    %v382 = vld [vmem:[%s372 + $0x24] sm:$0xf]
    %v383 = vld [vmem:[%s372 + $0x28] sm:$0xf]
    %v384 = vld [vmem:[%s372 + $0x2c] sm:$0xf]
    %v385 = vld [vmem:[%s372 + $0x30] sm:$0xf]
    %v386 = vld [vmem:[%s372 + $0x34] sm:$0xf]
    %v387 = vld [vmem:[%s372 + $0x38] sm:$0xf]
    %v388 = vld [vmem:[%s372 + $0x3c] sm:$0xf]
    %v389 = vpack.c.bf16 %v370, %v370
    %s390 = scalar_lea.vmem [#allocation2], 320
    %v391 = vld [vmem:[%s390] sm:$0xf]
    %v392 = vld [vmem:[%s390 + $0x4] sm:$0xf]
    %v393 = vld [vmem:[%s390 + $0x8] sm:$0xf]
    %v394 = vld [vmem:[%s390 + $0xc] sm:$0xf]
    %v395 = vld [vmem:[%s390 + $0x10] sm:$0xf]
    %v396 = vld [vmem:[%s390 + $0x14] sm:$0xf]
    %v397 = vld [vmem:[%s390 + $0x18] sm:$0xf]
    %v398 = vld [vmem:[%s390 + $0x1c] sm:$0xf]
    %v399 = vld [vmem:[%s390 + $0x20] sm:$0xf]
    %v400 = vld [vmem:[%s390 + $0x24] sm:$0xf]
    %v401 = vld [vmem:[%s390 + $0x28] sm:$0xf]
    %v402 = vld [vmem:[%s390 + $0x2c] sm:$0xf]
    %v403 = vld [vmem:[%s390 + $0x30] sm:$0xf]
    %v404 = vld [vmem:[%s390 + $0x34] sm:$0xf]
    %v405 = vld [vmem:[%s390 + $0x38] sm:$0xf]
    %v406 = vld [vmem:[%s390 + $0x3c] sm:$0xf]
    %v423 = vunpack.c.l.b16 %v391
    %v424 = vunpack.c.l.b16 %v392
    %v425 = vunpack.c.l.b16 %v393
    %v426 = vunpack.c.l.b16 %v394
    %v427 = vunpack.c.l.b16 %v395
    %v428 = vunpack.c.l.b16 %v396
    %v429 = vunpack.c.l.b16 %v397
    %v430 = vunpack.c.l.b16 %v398
    %v431 = vunpack.c.l.b16 %v399
    %v432 = vunpack.c.l.b16 %v400
    %v433 = vunpack.c.l.b16 %v401
    %v434 = vunpack.c.l.b16 %v402
    %v435 = vunpack.c.l.b16 %v403
    %v436 = vunpack.c.l.b16 %v404
    %v437 = vunpack.c.l.b16 %v405
    %v438 = vunpack.c.l.b16 %v406
    %v439 = vpack.c.b16 %v424, %v423
    %v440 = vpack.c.b16 %v426, %v425
    %v441 = vpack.c.b16 %v428, %v427
    %v442 = vpack.c.b16 %v430, %v429
    %v443 = vpack.c.b16 %v432, %v431
    %v444 = vpack.c.b16 %v434, %v433
    %v445 = vpack.c.b16 %v436, %v435
    %v446 = vpack.c.b16 %v438, %v437
    %455 = vmatpush.bf16.msra.mxu0 %v446
    %456 = vmatpush.bf16.msra.mxu0 %v445
    %457 = vmatpush.bf16.msra.mxu0 %v444
    %458 = vmatpush.bf16.msra.mxu0 %v443
    %459 = vmatpush.bf16.msra.mxu0 %v442
    %460 = vmatpush.bf16.msra.mxu0 %v441
    %461 = vmatpush.bf16.msra.mxu0 %v440
    %462 = vmatpush.bf16.msra.mxu0 %v439
    %463 = vmatmul.bf16.gmra.mxu0 %v389
    %v464 = vpop.f32.mrf.mxu0
    %v465 = vadd.f32 0.0, %v464
    %v466 = vpop.f32.mrf.mxu0
    %467 = vdwg.mxu0
    %v484 = vunpack.c.l.b16 %v373
    %v485 = vunpack.c.l.b16 %v374
    %v486 = vunpack.c.l.b16 %v375
    %v487 = vunpack.c.l.b16 %v376
    %v488 = vunpack.c.l.b16 %v377
    %v489 = vunpack.c.l.b16 %v378
    %v490 = vunpack.c.l.b16 %v379
    %v491 = vunpack.c.l.b16 %v380
    %v492 = vunpack.c.l.b16 %v381
    %v493 = vunpack.c.l.b16 %v382
    %v494 = vunpack.c.l.b16 %v383
    %v495 = vunpack.c.l.b16 %v384
    %v496 = vunpack.c.l.b16 %v385
    %v497 = vunpack.c.l.b16 %v386
    %v498 = vunpack.c.l.b16 %v387
    %v499 = vunpack.c.l.b16 %v388
    %v500 = vpack.c.b16 %v485, %v484
    %v501 = vpack.c.b16 %v487, %v486
    %v502 = vpack.c.b16 %v489, %v488
    %v503 = vpack.c.b16 %v491, %v490
    %v504 = vpack.c.b16 %v493, %v492
    %v505 = vpack.c.b16 %v495, %v494
    %v506 = vpack.c.b16 %v497, %v496
    %v507 = vpack.c.b16 %v499, %v498
    %516 = vmatpush.bf16.msra.mxu0 %v507
    %517 = vmatpush.bf16.msra.mxu0 %v506
    %518 = vmatpush.bf16.msra.mxu0 %v505
    %519 = vmatpush.bf16.msra.mxu0 %v504
    %520 = vmatpush.bf16.msra.mxu0 %v503
    %521 = vmatpush.bf16.msra.mxu0 %v502
    %522 = vmatpush.bf16.msra.mxu0 %v501
    %523 = vmatpush.bf16.msra.mxu0 %v500
    %524 = vmatmul.bf16.gmra.mxu0 %v371
    %v525 = vpop.f32.mrf.mxu0
    %v526 = vadd.f32 %v465, %v525
    %v527 = vpop.f32.mrf.mxu0
    %528 = vdwg.mxu0
    %v529 = vld [vmem:[#allocation4 + $0x4] sm:$0x1]
    %v530 = vadd.f32 %v526, %v529
    %531 = vst [vmem:[%s3] sm:$0x1] %v530
    // Predicated region
    $region22: #{fused_forward.1} parent=1 // pred_check
      _
    $region23: #{fused_forward.1} parent=1 // pred_check_branch
      %533 = sbr.rel (0) target = $region25
    $region24: #{fused_forward.1} parent=1 // pred_region
      _
    $region25: #{fused_forward.1} parent=1 // pred_fallthru
      _
    // Predicated region
    $region26: #{fused_forward.1} parent=1 // pred_check
      _
    $region27: #{fused_forward.1} parent=1 // pred_check_branch
      %535 = sbr.rel (0) target = $region29
    $region28: #{fused_forward.1} parent=1 // pred_region
      _
    $region29: #{fused_forward.1} parent=1 // pred_fallthru
      _
    %536 = vsyncpa [#allocation3], 1
    %537 = vsyncpa [#allocation5], 1

</llo_original>
